<compile_context>
chip_gen: v5e
topology: v5e:2x2
jax: 0.10.0
libtpu: 0.0.40
codegen_flags: <defaults>
</compile_context>

<pallas_src>
import jax
import jax.numpy as jnp
from jax.experimental import pallas as pl
from jax.experimental.pallas import tpu as pltpu

LN_EPS = 1e-5  # torch.nn.LayerNorm default


def _round_up(n, m):
    return ((n + m - 1) // m) * m


# ---------------------------------------------------------------------------
# Fused kernel factory (layer widths are compile-time constants of the kernel)
# ---------------------------------------------------------------------------
def _make_fused_mlp_kernel(hidden_dims):
    """hidden_dims: tuple of (true_width, padded_width) per hidden layer.

    Kernel args: x_ref, [wT, gamma, beta] * n_hidden, wT_final, o_ref."""

    def kernel(*refs):
        x_ref = refs[0]
        o_ref = refs[-1]

        # bf16 operands feed the MXU (f32 accumulation); post-math stays f32.
        h = x_ref[...].astype(jnp.bfloat16)
        idx = 1
        for n_true, n_pad in hidden_dims:
            wT_ref, gamma_ref, beta_ref = refs[idx], refs[idx + 1], refs[idx + 2]
            idx += 3

            # Linear (bias=False).  Padded weight columns are zero, so padded
            # output lanes are exactly 0.
            h = jnp.dot(h, wT_ref[...], preferred_element_type=jnp.float32)
            # ReLU (keeps padded lanes at 0).
            h = jnp.maximum(h, 0.0)

            # LayerNorm over the TRUE feature count.
            inv_n = jnp.float32(1.0 / n_true)
            mean = jnp.sum(h, axis=-1, keepdims=True) * inv_n  # padded lanes are 0
            c = h - mean
            if n_true == n_pad:
                var = jnp.sum(c * c, axis=-1, keepdims=True) * inv_n
            else:
                # c = -mean in padded lanes -> mask them out of the variance.
                lane = jax.lax.broadcasted_iota(jnp.int32, h.shape, 1)
                var = jnp.sum(jnp.where(lane < n_true, c * c, 0.0),
                              axis=-1, keepdims=True) * inv_n
            h = c * jax.lax.rsqrt(var + LN_EPS)
            # gamma/beta are zero-padded -> padded lanes return to exact 0.
            h = h * gamma_ref[...] + beta_ref[...]
            h = h.astype(jnp.bfloat16)

        # Final Linear (no activation, no norm).
        wT_ref = refs[idx]
        out = jnp.dot(h, wT_ref[...], preferred_element_type=jnp.float32)
        o_ref[...] = out.astype(o_ref.dtype)

    return kernel


# ---------------------------------------------------------------------------
# Wrapper: single pallas_call, batch-tiled grid, weights resident in VMEM
# ---------------------------------------------------------------------------
def _resident_spec(shape, single_buffer):
    # Whole-array block, same block index for every grid step -> stays in VMEM.
    index_map = lambda i: (0,) * len(shape)
    if single_buffer:
        # Grid-invariant operand: a second pipeline buffer is wasted VMEM.
        return pl.BlockSpec(shape, index_map, memory_space=pltpu.VMEM,
                            pipeline_mode=pl.Buffered(1))
    return pl.BlockSpec(shape, index_map, memory_space=pltpu.VMEM)


def _pick_tb(batch, tile_b):
    if batch <= 256:
        return batch  # one tile; block == full batch dim is always legal
    # Large batch: >=2 grid steps so both v7x TensorCores get work; rows
    # stay a multiple of 8 (sublane granularity).
    tb = min(tile_b, _round_up(pl.cdiv(batch, 2), 8))
    return min(tb, batch)


def mlp_forward(x, kparams, *, input_sizes, tile_b=1024):
    """kparams: padded kernel params from pad_params_for_kernel().
       input_sizes: original (un-padded) feature sizes, static."""
    B, in_features = x.shape
    n_layers = len(kparams)
    n_hidden = n_layers - 1

    k0_pad = int(kparams[0]["wT"].shape[0])
    out_true = int(input_sizes[-1])
    out_pad = int(kparams[-1]["wT"].shape[1])
    hidden_dims = tuple((int(input_sizes[i + 1]), int(kparams[i]["wT"].shape[1]))
                        for i in range(n_hidden))

    # Zero-pad the input features to the padded first-layer K.
    if in_features != k0_pad:
        x = jnp.pad(x, ((0, 0), (0, k0_pad - in_features)))

    tb = _pick_tb(B, tile_b)
    grid = (pl.cdiv(B, tb),)
    single_buffer = grid[0] > 1  # buffer count only matters when pipelining

    in_specs = [pl.BlockSpec((tb, k0_pad), lambda i: (i, 0),
                             memory_space=pltpu.VMEM)]
    flat_args = [x]
    for li, p in enumerate(kparams):
        in_specs.append(_resident_spec(p["wT"].shape, single_buffer))
        flat_args.append(p["wT"])
        if li < n_hidden:
            in_specs.append(_resident_spec(p["gamma"].shape, single_buffer))
            in_specs.append(_resident_spec(p["beta"].shape, single_buffer))
            flat_args.append(p["gamma"])
            flat_args.append(p["beta"])

    out_spec = pl.BlockSpec((tb, out_pad), lambda i: (i, 0),
                            memory_space=pltpu.VMEM)

    # ---- explicit VMEM budget (default scoped limit is only 16/32 MiB) -----
    wbuf = 1 if single_buffer else 2
    param_bytes = 0
    for p in kparams:
        for a in p.values():
            param_bytes += a.size * a.dtype.itemsize * wbuf
    max_pad = max([k0_pad, out_pad] + [d for _, d in hidden_dims])
    io_bytes = 2 * tb * k0_pad * 4 + 2 * tb * out_pad * 4   # double-buffered x/out
    act_bytes = 3 * tb * max_pad * 4                        # f32/bf16 intermediates
    needed = param_bytes + io_bytes + act_bytes
    vmem_limit = int(min(max(2 * needed + (1 << 20), 32 << 20), 64 << 20))

    # ---- cost estimate (true, un-padded dims) -------------------------------
    dims = [int(d) for d in input_sizes]
    flops = 2 * B * sum(dims[i] * dims[i + 1] for i in range(len(dims) - 1))
    bytes_accessed = int(x.size * x.dtype.itemsize
                         + param_bytes // wbuf
                         + B * out_true * 4)
    cost = pl.CostEstimate(flops=flops, transcendentals=B * n_hidden,
                           bytes_accessed=bytes_accessed)

    out_padded = pl.pallas_call(
        _make_fused_mlp_kernel(hidden_dims),
        out_shape=jax.ShapeDtypeStruct((B, out_pad), x.dtype),
        grid=grid,
        in_specs=in_specs,
        out_specs=out_spec,
        compiler_params=pltpu.CompilerParams(
            dimension_semantics=("parallel",),
            vmem_limit_bytes=vmem_limit),
        cost_estimate=cost,
    )(*flat_args)

    if out_pad != out_true:
        out_padded = out_padded[:, :out_true]
    return out_padded


# ---------------------------------------------------------------------------
# Deterministic parameter construction (mirrors nn.Linear / nn.LayerNorm init)
# ---------------------------------------------------------------------------
def make_params(key, input_sizes, dtype=jnp.float32):
    """Un-padded f32 params (reference layout)."""
    params = []
    n_linear = len(input_sizes) - 1
    for i in range(1, len(input_sizes)):
        fan_in, fan_out = input_sizes[i - 1], input_sizes[i]
        key, wk = jax.random.split(key)
        bound = 1.0 / (fan_in ** 0.5)
        # PyTorch Linear weight is [out, in]; store pre-transposed as [in, out].
        w = jax.random.uniform(wk, (fan_out, fan_in), dtype, -bound, bound)
        p = {"wT": jnp.asarray(w.T)}
        if i < n_linear:  # this layer is followed by relu + LayerNorm
            p["gamma"] = jnp.ones((1, fan_out), dtype)
            p["beta"] = jnp.zeros((1, fan_out), dtype)
        params.append(p)
    return params


def pad_params_for_kernel(params):
    """Zero-pad every feature dim to a multiple of 128; weights -> bf16."""
    kparams = []
    for p in params:
        k_true, n_true = p["wT"].shape
        k_pad, n_pad = _round_up(k_true, 128), _round_up(n_true, 128)
        w = jnp.zeros((k_pad, n_pad), jnp.bfloat16)
        w = w.at[:k_true, :n_true].set(p["wT"].astype(jnp.bfloat16))
        kp = {"wT": w}
        if "gamma" in p:
            g = jnp.zeros((1, n_pad), jnp.float32).at[:, :n_true].set(p["gamma"])
            b = jnp.zeros((1, n_pad), jnp.float32).at[:, :n_true].set(p["beta"])
            kp["gamma"], kp["beta"] = g, b
        kparams.append(kp)
    return kparams


# ---------------------------------------------------------------------------
# Pure-JAX reference for verification (f32, un-padded)
# ---------------------------------------------------------------------------
def mlp_reference(x, params):
    n_layers = len(params)
    for i, p in enumerate(params):
        x = x @ p["wT"]
        if i < n_layers - 1:
            x = jnp.maximum(x, 0.0)
            mean = jnp.mean(x, axis=-1, keepdims=True)
            var = jnp.mean((x - mean) ** 2, axis=-1, keepdims=True)
            x = (x - mean) * jax.lax.rsqrt(var + LN_EPS)
            x = x * p["gamma"] + p["beta"]
    return x


if __name__ == "__main__":
    # Small MLP: input_sizes = (32, 64, 48, 16), batch = 8
    input_sizes = (32, 64, 48, 16)
    batch = 8

    key = jax.random.PRNGKey(0)
    key, xk = jax.random.split(key)
    x = jax.random.normal(xk, (batch, input_sizes[0]), jnp.float32)

    params = make_params(key, input_sizes)          # un-padded f32 (reference)
    kparams = pad_params_for_kernel(params)         # padded bf16 (kernel)

    fwd = jax.jit(mlp_forward, static_argnames=("input_sizes", "tile_b"))
    out = fwd(x, kparams, input_sizes=input_sizes)
    out = jax.block_until_ready(out)

    ref = mlp_reference(x, params)
    assert out.shape == (batch, input_sizes[-1]), out.shape
    max_diff = float(jnp.max(jnp.abs(out - ref)))
    # bf16 matmul operands (f32 accumulate) -> loosened tolerance vs f32 ref.
    assert jnp.allclose(out, ref, atol=6e-2, rtol=6e-2), (
        "mismatch vs reference, max abs diff = %g" % max_diff)

    print("KERNEL_OK")
</pallas_src>

<mosaic_0001>
module attributes {stable_mosaic.version = 11 : i64} {
  func.func @kernel(%arg0: i32, %arg1: memref<8x128xf32, #tpu.memory_space<vmem>>, %arg2: memref<128x128xbf16, #tpu.memory_space<vmem>>, %arg3: memref<1x128xf32, #tpu.memory_space<vmem>>, %arg4: memref<1x128xf32, #tpu.memory_space<vmem>>, %arg5: memref<128x128xbf16, #tpu.memory_space<vmem>>, %arg6: memref<1x128xf32, #tpu.memory_space<vmem>>, %arg7: memref<1x128xf32, #tpu.memory_space<vmem>>, %arg8: memref<128x128xbf16, #tpu.memory_space<vmem>>, %arg9: memref<8x128xf32, #tpu.memory_space<vmem>>) attributes {dimension_semantics = [#tpu.dimension_semantics<parallel>], iteration_bounds = array<i64: 1>, scalar_prefetch = 0 : i64, scratch_operands = 0 : i64, tpu.core_type = #tpu.core_type<tc>, window_params = [{transform_indices = @transform_0, window_bounds = array<i64: 8, 128>}, {pipeline_mode = #tpu.pipeline_mode<synchronous>, transform_indices = @transform_1, window_bounds = array<i64: 128, 128>}, {pipeline_mode = #tpu.pipeline_mode<synchronous>, transform_indices = @transform_2, window_bounds = array<i64: 1, 128>}, {pipeline_mode = #tpu.pipeline_mode<synchronous>, transform_indices = @transform_3, window_bounds = array<i64: 1, 128>}, {pipeline_mode = #tpu.pipeline_mode<synchronous>, transform_indices = @transform_4, window_bounds = array<i64: 128, 128>}, {pipeline_mode = #tpu.pipeline_mode<synchronous>, transform_indices = @transform_5, window_bounds = array<i64: 1, 128>}, {pipeline_mode = #tpu.pipeline_mode<synchronous>, transform_indices = @transform_6, window_bounds = array<i64: 1, 128>}, {pipeline_mode = #tpu.pipeline_mode<synchronous>, transform_indices = @transform_7, window_bounds = array<i64: 128, 128>}, {transform_indices = @transform_8, window_bounds = array<i64: 8, 128>}]} {
    %c0 = arith.constant 0 : index
    %c0_0 = arith.constant 0 : index
    %0 = vector.load %arg1[%c0, %c0_0] : memref<8x128xf32, #tpu.memory_space<vmem>>, vector<8x128xf32>
    %1 = arith.truncf %0 : vector<8x128xf32> to vector<8x128xbf16>
    %c0_1 = arith.constant 0 : index
    %c0_2 = arith.constant 0 : index
    %2 = vector.load %arg2[%c0_1, %c0_2] : memref<128x128xbf16, #tpu.memory_space<vmem>>, vector<128x128xbf16>
    %cst = arith.constant dense<0.000000e+00> : vector<8x128xf32>
    %3 = tpu.matmul %1, %2, %cst {dimension_numbers = #tpu.dot_dimension_numbers<[1], [0], [0], [1], [0, 0, 1, 1], [], []>} : vector<8x128xbf16>, vector<128x128xbf16>, vector<8x128xf32> -> vector<8x128xf32>
    %cst_3 = arith.constant 0.000000e+00 : f32
    %4 = vector.broadcast %cst_3 : f32 to vector<8x128xf32>
    %5 = arith.maximumf %3, %4 : vector<8x128xf32>
    %cst_4 = arith.constant dense<0.000000e+00> : vector<8xf32>
    %6 = vector.multi_reduction <add>, %5, %cst_4 [1] : vector<8x128xf32> to vector<8xf32>
    %7 = vector.shape_cast %6 : vector<8xf32> to vector<8x1xf32>
    %cst_5 = arith.constant 1.562500e-02 : f32
    %8 = vector.broadcast %cst_5 : f32 to vector<8x1xf32>
    %9 = arith.mulf %7, %8 : vector<8x1xf32>
    %10 = vector.broadcast %9 : vector<8x1xf32> to vector<8x128xf32>
    %11 = arith.subf %5, %10 : vector<8x128xf32>
    %12 = tpu.iota {dimensions = array<i32: 1>} : vector<8x128xi32>
    %c64_i32 = arith.constant 64 : i32
    %13 = vector.broadcast %c64_i32 : i32 to vector<8x128xi32>
    %14 = arith.cmpi slt, %12, %13 : vector<8x128xi32>
    %15 = arith.mulf %11, %11 : vector<8x128xf32>
    %cst_6 = arith.constant 0.000000e+00 : f32
    %16 = vector.broadcast %cst_6 : f32 to vector<8x128xf32>
    %17 = arith.select %14, %15, %16 : vector<8x128xi1>, vector<8x128xf32>
    %cst_7 = arith.constant dense<0.000000e+00> : vector<8xf32>
    %18 = vector.multi_reduction <add>, %17, %cst_7 [1] : vector<8x128xf32> to vector<8xf32>
    %19 = vector.shape_cast %18 : vector<8xf32> to vector<8x1xf32>
    %cst_8 = arith.constant 1.562500e-02 : f32
    %20 = vector.broadcast %cst_8 : f32 to vector<8x1xf32>
    %21 = arith.mulf %19, %20 : vector<8x1xf32>
    %cst_9 = arith.constant 9.99999974E-6 : f32
    %22 = vector.broadcast %cst_9 : f32 to vector<8x1xf32>
    %23 = arith.addf %21, %22 : vector<8x1xf32>
    %24 = math.rsqrt %23 : vector<8x1xf32>
    %25 = vector.broadcast %24 : vector<8x1xf32> to vector<8x128xf32>
    %26 = arith.mulf %11, %25 : vector<8x128xf32>
    %c0_10 = arith.constant 0 : index
    %c0_11 = arith.constant 0 : index
    %27 = vector.load %arg3[%c0_10, %c0_11] : memref<1x128xf32, #tpu.memory_space<vmem>>, vector<1x128xf32>
    %28 = vector.broadcast %27 : vector<1x128xf32> to vector<8x128xf32>
    %29 = arith.mulf %26, %28 : vector<8x128xf32>
    %c0_12 = arith.constant 0 : index
    %c0_13 = arith.constant 0 : index
    %30 = vector.load %arg4[%c0_12, %c0_13] : memref<1x128xf32, #tpu.memory_space<vmem>>, vector<1x128xf32>
    %31 = vector.broadcast %30 : vector<1x128xf32> to vector<8x128xf32>
    %32 = arith.addf %29, %31 : vector<8x128xf32>
    %33 = arith.truncf %32 : vector<8x128xf32> to vector<8x128xbf16>
    %c0_14 = arith.constant 0 : index
    %c0_15 = arith.constant 0 : index
    %34 = vector.load %arg5[%c0_14, %c0_15] : memref<128x128xbf16, #tpu.memory_space<vmem>>, vector<128x128xbf16>
    %cst_16 = arith.constant dense<0.000000e+00> : vector<8x128xf32>
    %35 = tpu.matmul %33, %34, %cst_16 {dimension_numbers = #tpu.dot_dimension_numbers<[1], [0], [0], [1], [0, 0, 1, 1], [], []>} : vector<8x128xbf16>, vector<128x128xbf16>, vector<8x128xf32> -> vector<8x128xf32>
    %cst_17 = arith.constant 0.000000e+00 : f32
    %36 = vector.broadcast %cst_17 : f32 to vector<8x128xf32>
    %37 = arith.maximumf %35, %36 : vector<8x128xf32>
    %cst_18 = arith.constant dense<0.000000e+00> : vector<8xf32>
    %38 = vector.multi_reduction <add>, %37, %cst_18 [1] : vector<8x128xf32> to vector<8xf32>
    %39 = vector.shape_cast %38 : vector<8xf32> to vector<8x1xf32>
    %cst_19 = arith.constant 0.020833334 : f32
    %40 = vector.broadcast %cst_19 : f32 to vector<8x1xf32>
    %41 = arith.mulf %39, %40 : vector<8x1xf32>
    %42 = vector.broadcast %41 : vector<8x1xf32> to vector<8x128xf32>
    %43 = arith.subf %37, %42 : vector<8x128xf32>
    %44 = tpu.iota {dimensions = array<i32: 1>} : vector<8x128xi32>
    %c48_i32 = arith.constant 48 : i32
    %45 = vector.broadcast %c48_i32 : i32 to vector<8x128xi32>
    %46 = arith.cmpi slt, %44, %45 : vector<8x128xi32>
    %47 = arith.mulf %43, %43 : vector<8x128xf32>
    %cst_20 = arith.constant 0.000000e+00 : f32
    %48 = vector.broadcast %cst_20 : f32 to vector<8x128xf32>
    %49 = arith.select %46, %47, %48 : vector<8x128xi1>, vector<8x128xf32>
    %cst_21 = arith.constant dense<0.000000e+00> : vector<8xf32>
    %50 = vector.multi_reduction <add>, %49, %cst_21 [1] : vector<8x128xf32> to vector<8xf32>
    %51 = vector.shape_cast %50 : vector<8xf32> to vector<8x1xf32>
    %cst_22 = arith.constant 0.020833334 : f32
    %52 = vector.broadcast %cst_22 : f32 to vector<8x1xf32>
    %53 = arith.mulf %51, %52 : vector<8x1xf32>
    %cst_23 = arith.constant 9.99999974E-6 : f32
    %54 = vector.broadcast %cst_23 : f32 to vector<8x1xf32>
    %55 = arith.addf %53, %54 : vector<8x1xf32>
    %56 = math.rsqrt %55 : vector<8x1xf32>
    %57 = vector.broadcast %56 : vector<8x1xf32> to vector<8x128xf32>
    %58 = arith.mulf %43, %57 : vector<8x128xf32>
    %c0_24 = arith.constant 0 : index
    %c0_25 = arith.constant 0 : index
    %59 = vector.load %arg6[%c0_24, %c0_25] : memref<1x128xf32, #tpu.memory_space<vmem>>, vector<1x128xf32>
    %60 = vector.broadcast %59 : vector<1x128xf32> to vector<8x128xf32>
    %61 = arith.mulf %58, %60 : vector<8x128xf32>
    %c0_26 = arith.constant 0 : index
    %c0_27 = arith.constant 0 : index
    %62 = vector.load %arg7[%c0_26, %c0_27] : memref<1x128xf32, #tpu.memory_space<vmem>>, vector<1x128xf32>
    %63 = vector.broadcast %62 : vector<1x128xf32> to vector<8x128xf32>
    %64 = arith.addf %61, %63 : vector<8x128xf32>
    %65 = arith.truncf %64 : vector<8x128xf32> to vector<8x128xbf16>
    %c0_28 = arith.constant 0 : index
    %c0_29 = arith.constant 0 : index
    %66 = vector.load %arg8[%c0_28, %c0_29] : memref<128x128xbf16, #tpu.memory_space<vmem>>, vector<128x128xbf16>
    %cst_30 = arith.constant dense<0.000000e+00> : vector<8x128xf32>
    %67 = tpu.matmul %65, %66, %cst_30 {dimension_numbers = #tpu.dot_dimension_numbers<[1], [0], [0], [1], [0, 0, 1, 1], [], []>} : vector<8x128xbf16>, vector<128x128xbf16>, vector<8x128xf32> -> vector<8x128xf32>
    %c0_31 = arith.constant 0 : index
    %c0_32 = arith.constant 0 : index
    %68 = vector.load %arg9[%c0_31, %c0_32] : memref<8x128xf32, #tpu.memory_space<vmem>>, vector<8x128xf32>
    tpu.vector_store %arg9[%c0_31, %c0_32], %67 {strides = array<i32>} : memref<8x128xf32, #tpu.memory_space<vmem>>, vector<8x128xf32>,
    return
  }
  func.func @transform_0(%arg0: i32) -> (i32, i32) {
    %c0_i32 = arith.constant 0 : i32
    %c0_i32_0 = arith.constant 0 : i32
    return %arg0, %c0_i32 : i32, i32
  }
  func.func @transform_1(%arg0: i32) -> (i32, i32) {
    %c0_i32 = arith.constant 0 : i32
    %c0_i32_0 = arith.constant 0 : i32
    %c0_i32_1 = arith.constant 0 : i32
    return %c0_i32, %c0_i32_0 : i32, i32
  }
  func.func @transform_2(%arg0: i32) -> (i32, i32) {
    %c0_i32 = arith.constant 0 : i32
    %c0_i32_0 = arith.constant 0 : i32
    %c0_i32_1 = arith.constant 0 : i32
    return %c0_i32, %c0_i32_0 : i32, i32
  }
  func.func @transform_3(%arg0: i32) -> (i32, i32) {
    %c0_i32 = arith.constant 0 : i32
    %c0_i32_0 = arith.constant 0 : i32
    %c0_i32_1 = arith.constant 0 : i32
    return %c0_i32, %c0_i32_0 : i32, i32
  }
  func.func @transform_4(%arg0: i32) -> (i32, i32) {
    %c0_i32 = arith.constant 0 : i32
    %c0_i32_0 = arith.constant 0 : i32
    %c0_i32_1 = arith.constant 0 : i32
    return %c0_i32, %c0_i32_0 : i32, i32
  }
  func.func @transform_5(%arg0: i32) -> (i32, i32) {
    %c0_i32 = arith.constant 0 : i32
    %c0_i32_0 = arith.constant 0 : i32
    %c0_i32_1 = arith.constant 0 : i32
    return %c0_i32, %c0_i32_0 : i32, i32
  }
  func.func @transform_6(%arg0: i32) -> (i32, i32) {
    %c0_i32 = arith.constant 0 : i32
    %c0_i32_0 = arith.constant 0 : i32
    %c0_i32_1 = arith.constant 0 : i32
    return %c0_i32, %c0_i32_0 : i32, i32
  }
  func.func @transform_7(%arg0: i32) -> (i32, i32) {
    %c0_i32 = arith.constant 0 : i32
    %c0_i32_0 = arith.constant 0 : i32
    %c0_i32_1 = arith.constant 0 : i32
    return %c0_i32, %c0_i32_0 : i32, i32
  }
  func.func @transform_8(%arg0: i32) -> (i32, i32) {
    %c0_i32 = arith.constant 0 : i32
    %c0_i32_0 = arith.constant 0 : i32
    return %arg0, %c0_i32 : i32, i32
  }
}

</mosaic_0001>

<llo_original>
// kernel: mlp_forward.1
$region0: #{mlp_forward.1}
  #allocation0 [shape = 'u32[]', space=smem, size = 0x4, offset = 0x4, fixed_abs, tag = 'smem constant byte address 0x4 - core index']
  #allocation1 [shape = 'u32[72,128]{1,0:T(1,128)}', space=vmem, size = 0x9000, scoped, tag = 'internal scratch']
  %s0 = inlined_call_operand.vmem [shape: f32[8,128], index: 0, kind: input, shape index: {}]
  %s1 = inlined_call_operand.hbm [shape: bf16[128,128], index: 1, kind: input, shape index: {}]
  %s2 = inlined_call_operand.vmem [shape: f32[1,128], index: 2, kind: input, shape index: {}]
  %s3 = inlined_call_operand.vmem [shape: f32[1,128], index: 3, kind: input, shape index: {}]
  %s4 = inlined_call_operand.hbm [shape: bf16[128,128], index: 4, kind: input, shape index: {}]
  %s5 = inlined_call_operand.vmem [shape: f32[1,128], index: 5, kind: input, shape index: {}]
  %s6 = inlined_call_operand.vmem [shape: f32[1,128], index: 6, kind: input, shape index: {}]
  %s7 = inlined_call_operand.hbm [shape: bf16[128,128], index: 7, kind: input, shape index: {}]
  %s8 = inlined_call_operand.hbm [shape: f32[8,128], index: 8, kind: output, shape index: {}]
  %s9 = sld [smem:[#allocation0]]
  $region54: #{mlp_forward.1} parent=0
    _
  %s11 = ssub.s32 1, %s9
  %s12 = scalar_select 0, %s11, %s9
  $region1: #{mlp_forward.1} parent=0
    #allocation2 [shape = 'u8[32768]{0}', space=vmem, size = 0x8000, scoped, tag = 'input window, operand 1, single buffered']
    #allocation3 [shape = 's32[1]{0}', space=sflag, size = 0x4, scoped, tag = 'scoped memory for mlp_forward.1']
    #allocation4 [shape = 's32[1]{0}', space=sflag, size = 0x4, scoped, tag = 'scoped memory for mlp_forward.1']
    #allocation5 [shape = 'u8[32768]{0}', space=vmem, size = 0x8000, scoped, tag = 'input window, operand 4, single buffered']
    #allocation6 [shape = 's32[1]{0}', space=sflag, size = 0x4, scoped, tag = 'scoped memory for mlp_forward.1']
    #allocation7 [shape = 'u8[32768]{0}', space=vmem, size = 0x8000, scoped, tag = 'input window, operand 7, single buffered']
    #allocation8 [shape = 'u8[4096]{0}', space=vmem, size = 0x1000, scoped, tag = 'output window, operand 0, single buffered']
    %13 = vsyncpa [#allocation3], 0
    %14 = vsyncpa [#allocation6], 0
    %15 = vsyncpa [#allocation4], 0
    // Predicated region
    $region2: #{mlp_forward.1} parent=1 // pred_check
      _
    $region3: #{mlp_forward.1} parent=1 // pred_check_branch
      %17 = sbr.rel (0) target = $region5
    $region4: #{mlp_forward.1} parent=1 // pred_region
      _
    $region5: #{mlp_forward.1} parent=1 // pred_fallthru
      _
    // Predicated region
    $region6: #{mlp_forward.1} parent=1 // pred_check
      _
    $region7: #{mlp_forward.1} parent=1 // pred_check_branch
      %19 = sbr.rel (0) target = $region9
    $region8: #{mlp_forward.1} parent=1 // pred_region
      %21 = vsyncadd [#allocation3], 0
      %s22 = sshll.u32 %s1, 4
      %s23 = int_to_ptr.hbm [resolvable:$true] %s22
      %s24 = sshll.u32 [#allocation2], 4
      %s25 = int_to_ptr.vmem [resolvable:$true] %s24
      %30 = dma.hbm_to_vmem [thread:$0]  %s23, 1024, %s25, [#allocation3], 64, 64, 4
    $region9: #{mlp_forward.1} parent=1 // pred_fallthru
      _
    // Predicated region
    $region10: #{mlp_forward.1} parent=1 // pred_check
      _
    $region11: #{mlp_forward.1} parent=1 // pred_check_branch
      %32 = sbr.rel (0) target = $region13
    $region12: #{mlp_forward.1} parent=1 // pred_region
      _
    $region13: #{mlp_forward.1} parent=1 // pred_fallthru
      _
    // Predicated region
    $region14: #{mlp_forward.1} parent=1 // pred_check
      _
    $region15: #{mlp_forward.1} parent=1 // pred_check_branch
      %34 = sbr.rel (0) target = $region17
    $region16: #{mlp_forward.1} parent=1 // pred_region
      _
    $region17: #{mlp_forward.1} parent=1 // pred_fallthru
      _
    // Predicated region
    $region18: #{mlp_forward.1} parent=1 // pred_check
      _
    $region19: #{mlp_forward.1} parent=1 // pred_check_branch
      %36 = sbr.rel (0) target = $region21
    $region20: #{mlp_forward.1} parent=1 // pred_region
      %38 = vsyncadd [#allocation6], 0
      %s39 = sshll.u32 %s4, 4
      %s40 = int_to_ptr.hbm [resolvable:$true] %s39
      %s41 = sshll.u32 [#allocation5], 4
      %s42 = int_to_ptr.vmem [resolvable:$true] %s41
      %47 = dma.hbm_to_vmem [thread:$0]  %s40, 1024, %s42, [#allocation6], 64, 64, 4
    $region21: #{mlp_forward.1} parent=1 // pred_fallthru
      _
    // Predicated region
    $region22: #{mlp_forward.1} parent=1 // pred_check
      _
    $region23: #{mlp_forward.1} parent=1 // pred_check_branch
      %49 = sbr.rel (0) target = $region25
    $region24: #{mlp_forward.1} parent=1 // pred_region
      _
    $region25: #{mlp_forward.1} parent=1 // pred_fallthru
      _
    // Predicated region
    $region26: #{mlp_forward.1} parent=1 // pred_check
      _
    $region27: #{mlp_forward.1} parent=1 // pred_check_branch
      %51 = sbr.rel (0) target = $region29
    $region28: #{mlp_forward.1} parent=1 // pred_region
      _
    $region29: #{mlp_forward.1} parent=1 // pred_fallthru
      _
    // Predicated region
    $region30: #{mlp_forward.1} parent=1 // pred_check
      _
    $region31: #{mlp_forward.1} parent=1 // pred_check_branch
      %53 = sbr.rel (0) target = $region33
    $region32: #{mlp_forward.1} parent=1 // pred_region
      %55 = vsyncadd [#allocation6], 0
      %s56 = sshll.u32 %s7, 4
      %s57 = int_to_ptr.hbm [resolvable:$true] %s56
      %s58 = sshll.u32 [#allocation7], 4
      %s59 = int_to_ptr.vmem [resolvable:$true] %s58
      %64 = dma.hbm_to_vmem [thread:$0]  %s57, 1024, %s59, [#allocation6], 64, 64, 4
    $region33: #{mlp_forward.1} parent=1 // pred_fallthru
      _
    // Predicated region
    $region34: #{mlp_forward.1} parent=1 // pred_check
      _
    $region35: #{mlp_forward.1} parent=1 // pred_check_branch
      %66 = sbr.rel (0) target = $region37
    $region36: #{mlp_forward.1} parent=1 // pred_region
      %68 = dma.done [#allocation3], 1024
    $region37: #{mlp_forward.1} parent=1 // pred_fallthru
      _
    // Predicated region
    $region38: #{mlp_forward.1} parent=1 // pred_check
      _
    $region39: #{mlp_forward.1} parent=1 // pred_check_branch
      %70 = sbr.rel (0) target = $region41
    $region40: #{mlp_forward.1} parent=1 // pred_region
      %72 = dma.done [#allocation6], 1024
    $region41: #{mlp_forward.1} parent=1 // pred_fallthru
      _
    // Predicated region
    $region42: #{mlp_forward.1} parent=1 // pred_check
      _
    $region43: #{mlp_forward.1} parent=1 // pred_check_branch
      %74 = sbr.rel (0) target = $region45
    $region44: #{mlp_forward.1} parent=1 // pred_region
      %76 = dma.done [#allocation6], 1024
    $region45: #{mlp_forward.1} parent=1 // pred_fallthru
      _
    %v77 = vld [vmem:[%s0] sm:$0xff]
    %v78 = vpack.c.bf16 %v77, %v77
    %v79 = vld [vmem:[#allocation2] sm:$0xf]
    %v80 = vld [vmem:[#allocation2 + $0x4] sm:$0xf]
    %v81 = vld [vmem:[#allocation2 + $0x8] sm:$0xf]
    %v82 = vld [vmem:[#allocation2 + $0xc] sm:$0xf]
    %v83 = vld [vmem:[#allocation2 + $0x10] sm:$0xf]
    %v84 = vld [vmem:[#allocation2 + $0x14] sm:$0xf]
    %v85 = vld [vmem:[#allocation2 + $0x18] sm:$0xf]
    %v86 = vld [vmem:[#allocation2 + $0x1c] sm:$0xf]
    %v87 = vld [vmem:[#allocation2 + $0x20] sm:$0xf]
    %v88 = vld [vmem:[#allocation2 + $0x24] sm:$0xf]
    %v89 = vld [vmem:[#allocation2 + $0x28] sm:$0xf]
    %v90 = vld [vmem:[#allocation2 + $0x2c] sm:$0xf]
    %v91 = vld [vmem:[#allocation2 + $0x30] sm:$0xf]
    %v92 = vld [vmem:[#allocation2 + $0x34] sm:$0xf]
    %v93 = vld [vmem:[#allocation2 + $0x38] sm:$0xf]
    %v94 = vld [vmem:[#allocation2 + $0x3c] sm:$0xf]
    %v111 = vunpack.c.l.b16 %v79
    %v112 = vunpack.c.l.b16 %v80
    %v113 = vunpack.c.l.b16 %v81
    %v114 = vunpack.c.l.b16 %v82
    %v115 = vunpack.c.l.b16 %v83
    %v116 = vunpack.c.l.b16 %v84
    %v117 = vunpack.c.l.b16 %v85
    %v118 = vunpack.c.l.b16 %v86
    %v119 = vunpack.c.l.b16 %v87
    %v120 = vunpack.c.l.b16 %v88
    %v121 = vunpack.c.l.b16 %v89
    %v122 = vunpack.c.l.b16 %v90
    %v123 = vunpack.c.l.b16 %v91
    %v124 = vunpack.c.l.b16 %v92
    %v125 = vunpack.c.l.b16 %v93
    %v126 = vunpack.c.l.b16 %v94
    %v127 = vpack.c.b16 %v112, %v111
    %v128 = vpack.c.b16 %v114, %v113
    %v129 = vpack.c.b16 %v116, %v115
    %v130 = vpack.c.b16 %v118, %v117
    %v131 = vpack.c.b16 %v120, %v119
    %v132 = vpack.c.b16 %v122, %v121
    %v133 = vpack.c.b16 %v124, %v123
    %v134 = vpack.c.b16 %v126, %v125
    %143 = vmatpush.bf16.msra.mxu0 %v134
    %144 = vmatpush.bf16.msra.mxu0 %v133
    %145 = vmatpush.bf16.msra.mxu0 %v132
    %146 = vmatpush.bf16.msra.mxu0 %v131
    %147 = vmatpush.bf16.msra.mxu0 %v130
    %148 = vmatpush.bf16.msra.mxu0 %v129
    %149 = vmatpush.bf16.msra.mxu0 %v128
    %150 = vmatpush.bf16.msra.mxu0 %v127
    %151 = vmatmul.bf16.gmra.mxu0 %v78
    %v152 = vpop.f32.mrf.mxu0
    %v153 = vadd.f32 0.0, %v152
    %v154 = vpop.f32.mrf.mxu0
    %155 = vdwg.mxu0
    %v156 = vmax.f32 %v153, 0.0
    %157 = vadd.xlane.f32.xlu0 %v156
    %v158 = vpop.xlane.xlu0 %157
    %v159 = vmul.f32 %v158, 0.015625
    %v160 = vsub.f32 %v156, %v159
    %v161 = vlaneseq
    %v162 = vand.u32 %v161, 127
    %vm163 = vcmp.lt.s32.totalorder %v162, 64
    %v164 = vmul.f32 %v160, %v160
    %v165 = vsel %vm163, %v164, 0.0
    %166 = vadd.xlane.f32.xlu0 %v165
    %v167 = vpop.xlane.xlu0 %166
    %v168 = vmul.f32 %v167, 0.015625
    %v169 = vadd.f32 %v168, 1e-05
    %v170 = vrsqrt.pop %v169
    %v171 = vmul.f32 %v170, %v169
    %v172 = vmul.f32 %v171, %v170
    %v173 = vmul.f32 0.5, %v172
    %v174 = vsub.f32 1.5, %v173
    %v175 = vmul.f32 %v170, %v174
    %vm176 = vweird.f32 %v169
    %vm177 = vweird.f32 %v170
    %vm178 = vmor %vm176, %vm177
    %v179 = vsel %vm178, %v170, %v175
    %v180 = vmul.f32 %v160, %v179
    %v181 = vld [vmem:[%s2] sm:$0x1]
    %v183 = vperm.slane %v181, 0
    %v185 = vmul.f32 %v180, %v183
    %v186 = vld [vmem:[%s3] sm:$0x1]
    %v188 = vperm.slane %v186, 0
    %v190 = vadd.f32 %v185, %v188
    %v191 = vpack.c.bf16 %v190, %v190
    %v192 = vld [vmem:[#allocation5] sm:$0xf]
    %v193 = vld [vmem:[#allocation5 + $0x4] sm:$0xf]
    %v194 = vld [vmem:[#allocation5 + $0x8] sm:$0xf]
    %v195 = vld [vmem:[#allocation5 + $0xc] sm:$0xf]
    %v196 = vld [vmem:[#allocation5 + $0x10] sm:$0xf]
    %v197 = vld [vmem:[#allocation5 + $0x14] sm:$0xf]
    %v198 = vld [vmem:[#allocation5 + $0x18] sm:$0xf]
    %v199 = vld [vmem:[#allocation5 + $0x1c] sm:$0xf]
    %v200 = vld [vmem:[#allocation5 + $0x20] sm:$0xf]
    %v201 = vld [vmem:[#allocation5 + $0x24] sm:$0xf]
    %v202 = vld [vmem:[#allocation5 + $0x28] sm:$0xf]
    %v203 = vld [vmem:[#allocation5 + $0x2c] sm:$0xf]
    %v204 = vld [vmem:[#allocation5 + $0x30] sm:$0xf]
    %v205 = vld [vmem:[#allocation5 + $0x34] sm:$0xf]
    %v206 = vld [vmem:[#allocation5 + $0x38] sm:$0xf]
    %v207 = vld [vmem:[#allocation5 + $0x3c] sm:$0xf]
    %v224 = vunpack.c.l.b16 %v192
    %v225 = vunpack.c.l.b16 %v193
    %v226 = vunpack.c.l.b16 %v194
    %v227 = vunpack.c.l.b16 %v195
    %v228 = vunpack.c.l.b16 %v196
    %v229 = vunpack.c.l.b16 %v197
    %v230 = vunpack.c.l.b16 %v198
    %v231 = vunpack.c.l.b16 %v199
    %v232 = vunpack.c.l.b16 %v200
    %v233 = vunpack.c.l.b16 %v201
    %v234 = vunpack.c.l.b16 %v202
    %v235 = vunpack.c.l.b16 %v203
    %v236 = vunpack.c.l.b16 %v204
    %v237 = vunpack.c.l.b16 %v205
    %v238 = vunpack.c.l.b16 %v206
    %v239 = vunpack.c.l.b16 %v207
    %v240 = vpack.c.b16 %v225, %v224
    %v241 = vpack.c.b16 %v227, %v226
    %v242 = vpack.c.b16 %v229, %v228
    %v243 = vpack.c.b16 %v231, %v230
    %v244 = vpack.c.b16 %v233, %v232
    %v245 = vpack.c.b16 %v235, %v234
    %v246 = vpack.c.b16 %v237, %v236
    %v247 = vpack.c.b16 %v239, %v238
    %256 = vmatpush.bf16.msra.mxu0 %v247
    %257 = vmatpush.bf16.msra.mxu0 %v246
    %258 = vmatpush.bf16.msra.mxu0 %v245
    %259 = vmatpush.bf16.msra.mxu0 %v244
    %260 = vmatpush.bf16.msra.mxu0 %v243
    %261 = vmatpush.bf16.msra.mxu0 %v242
    %262 = vmatpush.bf16.msra.mxu0 %v241
    %263 = vmatpush.bf16.msra.mxu0 %v240
    %264 = vmatmul.bf16.gmra.mxu0 %v191
    %v265 = vpop.f32.mrf.mxu0
    %v266 = vadd.f32 0.0, %v265
    %v267 = vpop.f32.mrf.mxu0
    %268 = vdwg.mxu0
    %v269 = vmax.f32 %v266, 0.0
    %270 = vadd.xlane.f32.xlu0 %v269
    %v271 = vpop.xlane.xlu0 %270
    %v272 = vmul.f32 %v271, 0.020833334
    %v273 = vsub.f32 %v269, %v272
    %vm274 = vcmp.lt.s32.totalorder %v162, 48
    %v275 = vmul.f32 %v273, %v273
    %v276 = vsel %vm274, %v275, 0.0
    %277 = vadd.xlane.f32.xlu0 %v276
    %v278 = vpop.xlane.xlu0 %277
    %v279 = vmul.f32 %v278, 0.020833334
    %v280 = vadd.f32 %v279, 1e-05
    %v281 = vrsqrt.pop %v280
    %v282 = vmul.f32 %v281, %v280
    %v283 = vmul.f32 %v282, %v281
    %v284 = vmul.f32 0.5, %v283
    %v285 = vsub.f32 1.5, %v284
    %v286 = vmul.f32 %v281, %v285
    %vm287 = vweird.f32 %v280
    %vm288 = vweird.f32 %v281
    %vm289 = vmor %vm287, %vm288
    %v290 = vsel %vm289, %v281, %v286
    %v291 = vmul.f32 %v273, %v290
    %v292 = vld [vmem:[%s5] sm:$0x1]
    %v294 = vperm.slane %v292, 0
    %v296 = vmul.f32 %v291, %v294
    %v297 = vld [vmem:[%s6] sm:$0x1]
    %v299 = vperm.slane %v297, 0
    %v301 = vadd.f32 %v296, %v299
    %v302 = vpack.c.bf16 %v301, %v301
    %v303 = vld [vmem:[#allocation7] sm:$0xf]
    %v304 = vld [vmem:[#allocation7 + $0x4] sm:$0xf]
    %v305 = vld [vmem:[#allocation7 + $0x8] sm:$0xf]
    %v306 = vld [vmem:[#allocation7 + $0xc] sm:$0xf]
    %v307 = vld [vmem:[#allocation7 + $0x10] sm:$0xf]
    %v308 = vld [vmem:[#allocation7 + $0x14] sm:$0xf]
    %v309 = vld [vmem:[#allocation7 + $0x18] sm:$0xf]
    %v310 = vld [vmem:[#allocation7 + $0x1c] sm:$0xf]
    %v311 = vld [vmem:[#allocation7 + $0x20] sm:$0xf]
    %v312 = vld [vmem:[#allocation7 + $0x24] sm:$0xf]
    %v313 = vld [vmem:[#allocation7 + $0x28] sm:$0xf]
    %v314 = vld [vmem:[#allocation7 + $0x2c] sm:$0xf]
    %v315 = vld [vmem:[#allocation7 + $0x30] sm:$0xf]
    %v316 = vld [vmem:[#allocation7 + $0x34] sm:$0xf]
    %v317 = vld [vmem:[#allocation7 + $0x38] sm:$0xf]
    %v318 = vld [vmem:[#allocation7 + $0x3c] sm:$0xf]
    %v335 = vunpack.c.l.b16 %v303
    %v336 = vunpack.c.l.b16 %v304
    %v337 = vunpack.c.l.b16 %v305
    %v338 = vunpack.c.l.b16 %v306
    %v339 = vunpack.c.l.b16 %v307
    %v340 = vunpack.c.l.b16 %v308
    %v341 = vunpack.c.l.b16 %v309
    %v342 = vunpack.c.l.b16 %v310
    %v343 = vunpack.c.l.b16 %v311
    %v344 = vunpack.c.l.b16 %v312
    %v345 = vunpack.c.l.b16 %v313
    %v346 = vunpack.c.l.b16 %v314
    %v347 = vunpack.c.l.b16 %v315
    %v348 = vunpack.c.l.b16 %v316
    %v349 = vunpack.c.l.b16 %v317
    %v350 = vunpack.c.l.b16 %v318
    %v351 = vpack.c.b16 %v336, %v335
    %v352 = vpack.c.b16 %v338, %v337
    %v353 = vpack.c.b16 %v340, %v339
    %v354 = vpack.c.b16 %v342, %v341
    %v355 = vpack.c.b16 %v344, %v343
    %v356 = vpack.c.b16 %v346, %v345
    %v357 = vpack.c.b16 %v348, %v347
    %v358 = vpack.c.b16 %v350, %v349
    %367 = vmatpush.bf16.msra.mxu0 %v358
    %368 = vmatpush.bf16.msra.mxu0 %v357
    %369 = vmatpush.bf16.msra.mxu0 %v356
    %370 = vmatpush.bf16.msra.mxu0 %v355
    %371 = vmatpush.bf16.msra.mxu0 %v354
    %372 = vmatpush.bf16.msra.mxu0 %v353
    %373 = vmatpush.bf16.msra.mxu0 %v352
    %374 = vmatpush.bf16.msra.mxu0 %v351
    %375 = vmatmul.bf16.gmra.mxu0 %v302
    %v376 = vpop.f32.mrf.mxu0
    %v377 = vadd.f32 0.0, %v376
    %v378 = vpop.f32.mrf.mxu0
    %379 = vdwg.mxu0
    %380 = vst [vmem:[#allocation8] sm:$0xff] %v377
    // Predicated region
    $region46: #{mlp_forward.1} parent=1 // pred_check
      _
    $region47: #{mlp_forward.1} parent=1 // pred_check_branch
      %382 = sbr.rel (0) target = $region49
    $region48: #{mlp_forward.1} parent=1 // pred_region
      %384 = vsyncadd [#allocation4], 0
      %s386 = sshll.u32 [#allocation8], 4
      %s387 = int_to_ptr.vmem [resolvable:$true] %s386
      %s388 = sshll.u32 %s8, 4
      %s389 = int_to_ptr.hbm [resolvable:$true] %s388
      %391 = dma.vmem_to_hbm [thread:$0]  %s387, 128, %s389, [#allocation4]
    $region49: #{mlp_forward.1} parent=1 // pred_fallthru
      _
    // Predicated region
    $region50: #{mlp_forward.1} parent=1 // pred_check
      _
    $region51: #{mlp_forward.1} parent=1 // pred_check_branch
      %393 = sbr.rel (0) target = $region53
    $region52: #{mlp_forward.1} parent=1 // pred_region
      %395 = dma.done [#allocation4], 128
    $region53: #{mlp_forward.1} parent=1 // pred_fallthru
      _
    %396 = vsyncpa [#allocation3], 1
    %397 = vsyncpa [#allocation6], 1
    %398 = vsyncpa [#allocation4], 1

</llo_original>
